<compile_context>
chip_gen: v6e
topology: v6e:2x2x1
jax: 0.10.0
libtpu: 0.0.40
codegen_flags: <defaults>
</compile_context>

<pallas_src>
import functools

import jax
import jax.numpy as jnp
from jax.experimental import pallas as pl
from jax.experimental.pallas import tpu as pltpu


def _celoss_kernel(pred_ref, gt_ref, out_ref,
                   sum_vs_ref, sum_bce_ref, sum_bvs_ref, acc_ref, *,
                   hw, nc, row_block, hw_tile, row_steps, n_hw,
                   mask_rows, mask_cols):
    p = pl.program_id(0)   # split ("parallel" -> one per TensorCore on v7x)
    i = pl.program_id(1)   # row-block step within the split ("arbitrary")
    h = pl.program_id(2)   # lane (pixel) step within the row block ("arbitrary")

    @pl.when((i == 0) & (h == 0))
    def _init_split():
        acc_ref[...] = jnp.zeros_like(acc_ref)

    @pl.when(h == 0)
    def _init_row_block():
        sum_vs_ref[...] = jnp.zeros_like(sum_vs_ref)
        sum_bce_ref[...] = jnp.zeros_like(sum_bce_ref)
        sum_bvs_ref[...] = jnp.zeros_like(sum_bvs_ref)

    pred = pred_ref[...].astype(jnp.float32)   # (row_block, hw_tile)
    gt = gt_ref[...].astype(jnp.float32)

    vs = (gt > 0.0).astype(jnp.float32)
    # Numerically stable BCE-with-logits (reduction='none'):
    #   max(x, 0) - x * z + log(1 + exp(-|x|))
    # TODO(synk): a bf16 softplus path would relieve the single EUP slot on
    # v6e/v7x once inputs stream as bf16; keep f32 on v5e (no bf16 VPU/EUP).
    bce = jnp.maximum(pred, 0.0) - pred * gt + jnp.log1p(jnp.exp(-jnp.abs(pred)))

    if mask_cols:
        # Only when HW % hw_tile != 0: the tail lane block reads past HW;
        # zero those columns so per-row counts / sums stay exact.
        col = h * hw_tile + jax.lax.broadcasted_iota(jnp.int32, (1, hw_tile), 1)
        cvalid = col < hw
        vs = jnp.where(cvalid, vs, 0.0)
        bce = jnp.where(cvalid, bce, 0.0)

    # Per-row partials: three lane reduces (XLU slot), one extra VPU multiply.
    # No full-width accumulator is read or written.
    # TODO(synk): if the XLU ever binds, these reduces could be offloaded to
    # the idle MXU via a ones-vector matmul.
    sum_vs_ref[...] += jnp.sum(vs, axis=1, keepdims=True)
    sum_bce_ref[...] += jnp.sum(bce, axis=1, keepdims=True)
    sum_bvs_ref[...] += jnp.sum(bce * vs, axis=1, keepdims=True)

    @pl.when(h == n_hw - 1)
    def _finalize_row_block():
        # sum(bce*pond) = inv_pb*sum(bce) + (inv_ps - inv_pb)*sum(bce*vs)
        ns = sum_vs_ref[...] + 1.0                 # (row_block, 1)
        nb = jnp.float32(hw + 2) - ns              # HW - (ns - 1) + 1
        total = jnp.float32(hw + 3)                # nb + ns + 1
        inv_ps = total / ns
        inv_pb = total / nb
        row_loss = inv_pb * sum_bce_ref[...] + (inv_ps - inv_pb) * sum_bvs_ref[...]
        if mask_rows:
            # Rows past NC (partial tail block / phantom steps of an uneven
            # split) contain garbage; zero them on the (row_block, 1) vector.
            row0 = (p * row_steps + i) * row_block
            gidx = row0 + jax.lax.broadcasted_iota(jnp.int32, (row_block, 1), 0)
            row_loss = jnp.where(gidx < nc, row_loss, 0.0)
        acc_ref[...] += row_loss

    @pl.when((i == row_steps - 1) & (h == n_hw - 1))
    def _finalize_split():
        s = jnp.sum(acc_ref[...], keepdims=True)   # (1, 1) partial sum of split
        out_ref[...] = jnp.broadcast_to(s, out_ref.shape)


def _round_up(x, m):
    return -(-x // m) * m


def _vmem_capacity_bytes():
    try:
        info = pltpu.get_tpu_info()
        cap = getattr(info, "vmem_capacity_bytes", None)
        if cap:
            return int(cap)
    except Exception:
        pass
    return 64 << 20        # conservative fallback (v7x per-core physical VMEM)


def _choose_tiling(nc, hw, pair_bytes, budget):
    """Pick grid / block geometry.

    Blocks are (row_block, hw_tile).  Only the double-buffered input tiles are
    large VMEM consumers (accumulators are (row_block, 1) vectors), so the
    pipelined footprint is ~ 2 * row_block * hw_tile * pair_bytes <= budget.
    """
    per_elem = 2 * pair_bytes                       # both inputs, double-buffered
    if hw <= 128 or 8 * hw * per_elem <= budget:
        hw_tile = hw                                # full rows, no column mask
    else:
        hw_tile = max(128, (budget // (8 * per_elem)) // 128 * 128)
        hw_tile = min(hw_tile, (hw // 128) * 128)
    n_hw = -(-hw // hw_tile)
    mask_cols = (hw % hw_tile != 0)

    max_row_block = max(8, (budget // (hw_tile * per_elem)) // 8 * 8)
    n_splits = 2 if nc >= 16 else 1                 # shard row blocks across 2 TCs (v7x)
    if n_splits == 1 and nc <= max_row_block:
        row_block = nc                              # block == full row extent
    else:
        row_block = min(max_row_block, _round_up(-(-nc // n_splits), 8))
    total_blocks = -(-nc // row_block)
    n_splits = min(n_splits, total_blocks)
    row_steps = -(-total_blocks // n_splits)        # balanced by steps
    mask_rows = (n_splits * row_steps * row_block != nc)
    return (n_splits, row_steps, row_block, total_blocks,
            n_hw, hw_tile, mask_rows, mask_cols)


def ce_loss_pallas(pred, gt, *, block_budget_bytes=None):
    """pred, gt: (N, C, H, W) arrays (NCHW). Returns scalar f32 loss."""
    assert pred.shape == gt.shape and pred.ndim == 4
    N, C, H, W = pred.shape
    NC, HW = N * C, H * W

    # Contiguous (free) reshape; inputs keep their native dtype -- the kernel
    # casts per block, so bf16 inputs stream from HBM at half the bytes.
    pred2 = pred.reshape(NC, HW)
    gt2 = gt.reshape(NC, HW)

    pair_bytes = pred2.dtype.itemsize + gt2.dtype.itemsize
    cap = _vmem_capacity_bytes()
    if block_budget_bytes is None:
        # ~1/3 of physical VMEM for the pipelined input tiles, capped at
        # 48 MiB (128 MiB parts); 64 MiB v7x parts get ~21 MiB.
        block_budget_bytes = min(max(cap // 3, 8 << 20), 48 << 20)

    (n_splits, row_steps, row_block, total_blocks,
     n_hw, hw_tile, mask_rows, mask_cols) = _choose_tiling(
         NC, HW, pair_bytes, block_budget_bytes)

    last_block = total_blocks - 1

    kernel = functools.partial(
        _celoss_kernel, hw=HW, nc=NC, row_block=row_block, hw_tile=hw_tile,
        row_steps=row_steps, n_hw=n_hw, mask_rows=mask_rows, mask_cols=mask_cols)

    def in_map(p, i, h):
        # No wrapper-side padding: the tail row block is a partial edge block
        # (masked in-kernel), and phantom steps of an uneven 2-way split are
        # clamped onto the last real block and fully masked in-kernel.
        return (jnp.minimum(p * row_steps + i, last_block), h)

    in_spec = pl.BlockSpec((row_block, hw_tile), in_map)

    # Scoped-VMEM limit: actual double-buffered input footprint + headroom,
    # clamped below the *physical* VMEM of this chip generation.
    vmem_need = 2 * row_block * hw_tile * pair_bytes + (4 << 20)
    vmem_limit = int(min(max(vmem_need, 16 << 20), cap - (4 << 20)))

    out = pl.pallas_call(
        kernel,
        out_shape=jax.ShapeDtypeStruct((n_splits * 8, 128), jnp.float32),
        grid_spec=pltpu.PrefetchScalarGridSpec(
            num_scalar_prefetch=0,
            grid=(n_splits, row_steps, n_hw),
            in_specs=[in_spec, in_spec],
            out_specs=pl.BlockSpec((8, 128), lambda p, i, h: (p, 0)),
            scratch_shapes=[pltpu.VMEM((row_block, 1), jnp.float32)] * 4,
        ),
        compiler_params=pltpu.CompilerParams(
            dimension_semantics=("parallel", "arbitrary", "arbitrary"),
            vmem_limit_bytes=vmem_limit),
    )(pred2, gt2)

    # Each split broadcast its partial sum over its (8, 128) output block.
    per_split = out.reshape(n_splits, 8, 128)[:, 0, 0]
    return jnp.sum(per_split) / jnp.float32(NC * HW)


def ce_loss_ref(pred, gt):
    """Pure-JAX reference mirroring the PyTorch ce_loss."""
    x = pred.astype(jnp.float32)
    z = gt.astype(jnp.float32)
    vb = (z <= 0.0).astype(jnp.float32)
    vs = (z > 0.0).astype(jnp.float32)
    nb = jnp.sum(vb, axis=(2, 3)) + 1.0
    ns = jnp.sum(vs, axis=(2, 3)) + 1.0
    total = nb + ns + 1.0
    pb = nb / total
    ps = ns / total
    bce = jnp.maximum(x, 0.0) - x * z + jnp.log1p(jnp.exp(-jnp.abs(x)))
    pond = vs * (1.0 / ps)[:, :, None, None] + vb * (1.0 / pb)[:, :, None, None]
    return jnp.mean(bce * pond)


if __name__ == "__main__":
    key = jax.random.PRNGKey(0)
    # (shape, forced block budget or None).  The tiny forced budgets exercise
    # the lane-tiled (multi hw-step + column-mask) path and the uneven 2-way
    # split (phantom-step) path at small sizes.
    cases = [
        ((2, 4, 16, 16), None),     # NC=8: 1 split, full rows, single block
        ((3, 5, 24, 40), None),     # NC=15, HW=960 (not /128): full-dim block
        ((5, 5, 16, 24), None),     # NC=25: 2 splits, partial tail row block
        ((2, 16, 32, 32), None),    # NC=32: 2 splits, no masking
        ((2, 4, 16, 40), 1 << 16),  # HW=640 -> 512-lane tiles + column mask
        ((5, 8, 16, 40), 1 << 16),  # NC=40: uneven 2-way split (phantom step)
    ]
    for shp, budget in cases:
        key, k1, k2 = jax.random.split(key, 3)
        pred = jax.random.normal(k1, shp, dtype=jnp.float32)
        # targets in [-1, 1] so both positive and non-positive labels occur
        gt = jax.random.uniform(k2, shp, dtype=jnp.float32,
                                minval=-1.0, maxval=1.0)
        loss = jax.block_until_ready(
            ce_loss_pallas(pred, gt, block_budget_bytes=budget))
        ref = jax.block_until_ready(ce_loss_ref(pred, gt))
        assert jnp.allclose(loss, ref, rtol=1e-4, atol=1e-5), (shp, budget, loss, ref)
    print("KERNEL_OK")
</pallas_src>

<mosaic_0001>
module attributes {stable_mosaic.version = 11 : i64} {
  func.func @_celoss_kernel(%arg0: i32, %arg1: i32, %arg2: i32, %arg3: memref<8x256xf32, #tpu.memory_space<vmem>>, %arg4: memref<8x256xf32, #tpu.memory_space<vmem>>, %arg5: memref<8x128xf32, #tpu.memory_space<vmem>>, %arg6: memref<8x1xf32, #tpu.memory_space<vmem>>, %arg7: memref<8x1xf32, #tpu.memory_space<vmem>>, %arg8: memref<8x1xf32, #tpu.memory_space<vmem>>, %arg9: memref<8x1xf32, #tpu.memory_space<vmem>>) attributes {dimension_semantics = [#tpu.dimension_semantics<parallel>, #tpu.dimension_semantics<arbitrary>, #tpu.dimension_semantics<arbitrary>], iteration_bounds = array<i64: 1, 1, 1>, scalar_prefetch = 0 : i64, scratch_operands = 4 : i64, tpu.core_type = #tpu.core_type<tc>, window_params = [{transform_indices = @transform_0, window_bounds = array<i64: 8, 256>}, {transform_indices = @transform_1, window_bounds = array<i64: 8, 256>}, {transform_indices = @transform_2, window_bounds = array<i64: 8, 128>}]} {
    %c0_i32 = arith.constant 0 : i32
    %0 = arith.cmpi eq, %arg1, %c0_i32 : i32
    %c0_i32_0 = arith.constant 0 : i32
    %1 = arith.cmpi eq, %arg2, %c0_i32_0 : i32
    %2 = arith.andi %0, %1 : i1
    %3 = arith.extui %2 : i1 to i32
    %c0_i32_1 = arith.constant 0 : i32
    %4 = arith.cmpi ne, %3, %c0_i32_1 : i32
    scf.if %4 {
      %cst_29 = arith.constant 0.000000e+00 : f32
      %48 = vector.broadcast %cst_29 : f32 to vector<8x1xf32>
      %c0_30 = arith.constant 0 : index
      %c0_31 = arith.constant 0 : index
      %49 = vector.load %arg9[%c0_30, %c0_31] : memref<8x1xf32, #tpu.memory_space<vmem>>, vector<8x1xf32>
      tpu.vector_store %arg9[%c0_30, %c0_31], %48 {strides = array<i32>} : memref<8x1xf32, #tpu.memory_space<vmem>>, vector<8x1xf32>,
    } else {
    }
    %c0_i32_2 = arith.constant 0 : i32
    %5 = arith.cmpi eq, %arg2, %c0_i32_2 : i32
    %6 = arith.extui %5 : i1 to i32
    %c0_i32_3 = arith.constant 0 : i32
    %7 = arith.cmpi ne, %6, %c0_i32_3 : i32
    scf.if %7 {
      %cst_29 = arith.constant 0.000000e+00 : f32
      %48 = vector.broadcast %cst_29 : f32 to vector<8x1xf32>
      %c0_30 = arith.constant 0 : index
      %c0_31 = arith.constant 0 : index
      %49 = vector.load %arg6[%c0_30, %c0_31] : memref<8x1xf32, #tpu.memory_space<vmem>>, vector<8x1xf32>
      tpu.vector_store %arg6[%c0_30, %c0_31], %48 {strides = array<i32>} : memref<8x1xf32, #tpu.memory_space<vmem>>, vector<8x1xf32>,
      %cst_32 = arith.constant 0.000000e+00 : f32
      %50 = vector.broadcast %cst_32 : f32 to vector<8x1xf32>
      %c0_33 = arith.constant 0 : index
      %c0_34 = arith.constant 0 : index
      %51 = vector.load %arg7[%c0_33, %c0_34] : memref<8x1xf32, #tpu.memory_space<vmem>>, vector<8x1xf32>
      tpu.vector_store %arg7[%c0_33, %c0_34], %50 {strides = array<i32>} : memref<8x1xf32, #tpu.memory_space<vmem>>, vector<8x1xf32>,
      %cst_35 = arith.constant 0.000000e+00 : f32
      %52 = vector.broadcast %cst_35 : f32 to vector<8x1xf32>
      %c0_36 = arith.constant 0 : index
      %c0_37 = arith.constant 0 : index
      %53 = vector.load %arg8[%c0_36, %c0_37] : memref<8x1xf32, #tpu.memory_space<vmem>>, vector<8x1xf32>
      tpu.vector_store %arg8[%c0_36, %c0_37], %52 {strides = array<i32>} : memref<8x1xf32, #tpu.memory_space<vmem>>, vector<8x1xf32>,
    } else {
    }
    %c0 = arith.constant 0 : index
    %c0_4 = arith.constant 0 : index
    %8 = vector.load %arg3[%c0, %c0_4] : memref<8x256xf32, #tpu.memory_space<vmem>>, vector<8x256xf32>
    %c0_5 = arith.constant 0 : index
    %c0_6 = arith.constant 0 : index
    %9 = vector.load %arg4[%c0_5, %c0_6] : memref<8x256xf32, #tpu.memory_space<vmem>>, vector<8x256xf32>
    %cst = arith.constant 0.000000e+00 : f32
    %10 = vector.broadcast %cst : f32 to vector<8x256xf32>
    %11 = arith.cmpf ogt, %9, %10 : vector<8x256xf32>
    %12 = arith.extui %11 : vector<8x256xi1> to vector<8x256xi32>
    %13 = arith.sitofp %12 : vector<8x256xi32> to vector<8x256xf32>
    %cst_7 = arith.constant 0.000000e+00 : f32
    %14 = vector.broadcast %cst_7 : f32 to vector<8x256xf32>
    %15 = arith.maximumf %8, %14 : vector<8x256xf32>
    %16 = arith.mulf %8, %9 : vector<8x256xf32>
    %17 = arith.subf %15, %16 : vector<8x256xf32>
    %18 = math.absf %8 : vector<8x256xf32>
    %cst_8 = arith.constant 0.000000e+00 : f32
    %19 = vector.broadcast %cst_8 : f32 to vector<8x256xf32>
    %20 = arith.subf %19, %18 : vector<8x256xf32>
    %21 = math.exp %20 : vector<8x256xf32>
    %22 = math.log1p %21 : vector<8x256xf32>
    %23 = arith.addf %17, %22 : vector<8x256xf32>
    %c0_9 = arith.constant 0 : index
    %c0_10 = arith.constant 0 : index
    %24 = vector.load %arg6[%c0_9, %c0_10] : memref<8x1xf32, #tpu.memory_space<vmem>>, vector<8x1xf32>
    %cst_11 = arith.constant dense<0.000000e+00> : vector<8xf32>
    %25 = vector.multi_reduction <add>, %13, %cst_11 [1] : vector<8x256xf32> to vector<8xf32>
    %26 = vector.shape_cast %25 : vector<8xf32> to vector<8x1xf32>
    %27 = arith.addf %24, %26 : vector<8x1xf32>
    %c0_12 = arith.constant 0 : index
    %c0_13 = arith.constant 0 : index
    %28 = vector.load %arg6[%c0_12, %c0_13] : memref<8x1xf32, #tpu.memory_space<vmem>>, vector<8x1xf32>
    tpu.vector_store %arg6[%c0_12, %c0_13], %27 {strides = array<i32>} : memref<8x1xf32, #tpu.memory_space<vmem>>, vector<8x1xf32>,
    %c0_14 = arith.constant 0 : index
    %c0_15 = arith.constant 0 : index
    %29 = vector.load %arg7[%c0_14, %c0_15] : memref<8x1xf32, #tpu.memory_space<vmem>>, vector<8x1xf32>
    %cst_16 = arith.constant dense<0.000000e+00> : vector<8xf32>
    %30 = vector.multi_reduction <add>, %23, %cst_16 [1] : vector<8x256xf32> to vector<8xf32>
    %31 = vector.shape_cast %30 : vector<8xf32> to vector<8x1xf32>
    %32 = arith.addf %29, %31 : vector<8x1xf32>
    %c0_17 = arith.constant 0 : index
    %c0_18 = arith.constant 0 : index
    %33 = vector.load %arg7[%c0_17, %c0_18] : memref<8x1xf32, #tpu.memory_space<vmem>>, vector<8x1xf32>
    tpu.vector_store %arg7[%c0_17, %c0_18], %32 {strides = array<i32>} : memref<8x1xf32, #tpu.memory_space<vmem>>, vector<8x1xf32>,
    %c0_19 = arith.constant 0 : index
    %c0_20 = arith.constant 0 : index
    %34 = vector.load %arg8[%c0_19, %c0_20] : memref<8x1xf32, #tpu.memory_space<vmem>>, vector<8x1xf32>
    %35 = arith.mulf %23, %13 : vector<8x256xf32>
    %cst_21 = arith.constant dense<0.000000e+00> : vector<8xf32>
    %36 = vector.multi_reduction <add>, %35, %cst_21 [1] : vector<8x256xf32> to vector<8xf32>
    %37 = vector.shape_cast %36 : vector<8xf32> to vector<8x1xf32>
    %38 = arith.addf %34, %37 : vector<8x1xf32>
    %c0_22 = arith.constant 0 : index
    %c0_23 = arith.constant 0 : index
    %39 = vector.load %arg8[%c0_22, %c0_23] : memref<8x1xf32, #tpu.memory_space<vmem>>, vector<8x1xf32>
    tpu.vector_store %arg8[%c0_22, %c0_23], %38 {strides = array<i32>} : memref<8x1xf32, #tpu.memory_space<vmem>>, vector<8x1xf32>,
    %c0_i32_24 = arith.constant 0 : i32
    %40 = arith.cmpi eq, %arg2, %c0_i32_24 : i32
    %41 = arith.extui %40 : i1 to i32
    %c0_i32_25 = arith.constant 0 : i32
    %42 = arith.cmpi ne, %41, %c0_i32_25 : i32
    scf.if %42 {
      %c0_29 = arith.constant 0 : index
      %c0_30 = arith.constant 0 : index
      %48 = vector.load %arg6[%c0_29, %c0_30] : memref<8x1xf32, #tpu.memory_space<vmem>>, vector<8x1xf32>
      %cst_31 = arith.constant 1.000000e+00 : f32
      %49 = vector.broadcast %cst_31 : f32 to vector<8x1xf32>
      %50 = arith.addf %48, %49 : vector<8x1xf32>
      %cst_32 = arith.constant 2.580000e+02 : f32
      %51 = vector.broadcast %cst_32 : f32 to vector<8x1xf32>
      %52 = arith.subf %51, %50 : vector<8x1xf32>
      %cst_33 = arith.constant 2.590000e+02 : f32
      %53 = vector.broadcast %cst_33 : f32 to vector<8x1xf32>
      %54 = arith.divf %53, %50 : vector<8x1xf32>
      %cst_34 = arith.constant 2.590000e+02 : f32
      %55 = vector.broadcast %cst_34 : f32 to vector<8x1xf32>
      %56 = arith.divf %55, %52 : vector<8x1xf32>
      %c0_35 = arith.constant 0 : index
      %c0_36 = arith.constant 0 : index
      %57 = vector.load %arg7[%c0_35, %c0_36] : memref<8x1xf32, #tpu.memory_space<vmem>>, vector<8x1xf32>
      %58 = arith.mulf %56, %57 : vector<8x1xf32>
      %59 = arith.subf %54, %56 : vector<8x1xf32>
      %c0_37 = arith.constant 0 : index
      %c0_38 = arith.constant 0 : index
      %60 = vector.load %arg8[%c0_37, %c0_38] : memref<8x1xf32, #tpu.memory_space<vmem>>, vector<8x1xf32>
      %61 = arith.mulf %59, %60 : vector<8x1xf32>
      %62 = arith.addf %58, %61 : vector<8x1xf32>
      %c0_39 = arith.constant 0 : index
      %c0_40 = arith.constant 0 : index
      %63 = vector.load %arg9[%c0_39, %c0_40] : memref<8x1xf32, #tpu.memory_space<vmem>>, vector<8x1xf32>
      %64 = arith.addf %63, %62 : vector<8x1xf32>
      %c0_41 = arith.constant 0 : index
      %c0_42 = arith.constant 0 : index
      %65 = vector.load %arg9[%c0_41, %c0_42] : memref<8x1xf32, #tpu.memory_space<vmem>>, vector<8x1xf32>
      tpu.vector_store %arg9[%c0_41, %c0_42], %64 {strides = array<i32>} : memref<8x1xf32, #tpu.memory_space<vmem>>, vector<8x1xf32>,
    } else {
    }
    %c0_i32_26 = arith.constant 0 : i32
    %43 = arith.cmpi eq, %arg1, %c0_i32_26 : i32
    %c0_i32_27 = arith.constant 0 : i32
    %44 = arith.cmpi eq, %arg2, %c0_i32_27 : i32
    %45 = arith.andi %43, %44 : i1
    %46 = arith.extui %45 : i1 to i32
    %c0_i32_28 = arith.constant 0 : i32
    %47 = arith.cmpi ne, %46, %c0_i32_28 : i32
    scf.if %47 {
      %c0_29 = arith.constant 0 : index
      %c0_30 = arith.constant 0 : index
      %48 = vector.load %arg9[%c0_29, %c0_30] : memref<8x1xf32, #tpu.memory_space<vmem>>, vector<8x1xf32>
      %49 = vector.shape_cast %48 : vector<8x1xf32> to vector<1x8x1xf32>
      %cst_31 = arith.constant dense<0.000000e+00> : vector<1xf32>
      %50 = vector.multi_reduction <add>, %49, %cst_31 [1, 2] : vector<1x8x1xf32> to vector<1xf32>
      %51 = vector.shape_cast %50 : vector<1xf32> to vector<1x1x1xf32>
      %52 = vector.extract %51[0, 0, 0] : f32 from vector<1x1x1xf32>
      %53 = vector.broadcast %52 : f32 to vector<1x1xf32>
      %54 = vector.shape_cast %53 : vector<1x1xf32> to vector<1x1xf32>
      %55 = vector.broadcast %54 : vector<1x1xf32> to vector<8x128xf32>
      %c0_32 = arith.constant 0 : index
      %c0_33 = arith.constant 0 : index
      %56 = vector.load %arg5[%c0_32, %c0_33] : memref<8x128xf32, #tpu.memory_space<vmem>>, vector<8x128xf32>
      tpu.vector_store %arg5[%c0_32, %c0_33], %55 {strides = array<i32>} : memref<8x128xf32, #tpu.memory_space<vmem>>, vector<8x128xf32>,
    } else {
    }
    return
  }
  func.func @transform_0(%arg0: i32, %arg1: i32, %arg2: i32) -> (i32, i32) {
    %c1_i32 = arith.constant 1 : i32
    %0 = arith.muli %arg0, %c1_i32 : i32
    %1 = arith.addi %0, %arg1 : i32
    %c0_i32 = arith.constant 0 : i32
    %2 = arith.minsi %1, %c0_i32 : i32
    %c0_i32_0 = arith.constant 0 : i32
    return %2, %arg2 : i32, i32
  }
  func.func @transform_1(%arg0: i32, %arg1: i32, %arg2: i32) -> (i32, i32) {
    %c1_i32 = arith.constant 1 : i32
    %0 = arith.muli %arg0, %c1_i32 : i32
    %1 = arith.addi %0, %arg1 : i32
    %c0_i32 = arith.constant 0 : i32
    %2 = arith.minsi %1, %c0_i32 : i32
    %c0_i32_0 = arith.constant 0 : i32
    return %2, %arg2 : i32, i32
  }
  func.func @transform_2(%arg0: i32, %arg1: i32, %arg2: i32) -> (i32, i32) {
    %c0_i32 = arith.constant 0 : i32
    %c0_i32_0 = arith.constant 0 : i32
    return %arg0, %c0_i32 : i32, i32
  }
}

</mosaic_0001>

<llo_original>
// kernel: tpu_custom_call.1
$region0: #{tpu_custom_call.1}
  #allocation0 [shape = 'u32[]', space=smem, size = 0x4, offset = 0x4, fixed_abs, tag = 'smem constant byte address 0x4 - core index']
  #allocation1 [shape = 'u32[144,128]{1,0:T(1,128)}', space=vmem, size = 0x12000, scoped, tag = 'internal scratch']
  #allocation2 [shape = 'f32[8,1]{1,0:T(8,128)}', space=vmem, size = 0x1000, scoped, tag = 'scratch operand']
  #allocation3 [shape = 'f32[8,1]{1,0:T(8,128)}', space=vmem, size = 0x1000, scoped, tag = 'scratch operand']
  #allocation4 [shape = 'f32[8,1]{1,0:T(8,128)}', space=vmem, size = 0x1000, scoped, tag = 'scratch operand']
  #allocation5 [shape = 'f32[8,1]{1,0:T(8,128)}', space=vmem, size = 0x1000, scoped, tag = 'scratch operand']
  %s0 = inlined_call_operand.hbm [shape: f32[8,256], index: 0, kind: input, shape index: {}]
  %s1 = inlined_call_operand.hbm [shape: f32[8,256], index: 1, kind: input, shape index: {}]
  %s2 = inlined_call_operand.hbm [shape: f32[8,128], index: 2, kind: output, shape index: {}]
  %s3 = sld [smem:[#allocation0]]
  $region42: #{tpu_custom_call.1} parent=0
    _
  %s5 = ssub.s32 1, %s3
  %s6 = scalar_select 0, %s5, %s3
  $region1: #{tpu_custom_call.1} parent=0
    #allocation6 [shape = 'u8[8192]{0}', space=vmem, size = 0x2000, scoped, tag = 'input window, operand 0, single buffered']
    #allocation7 [shape = 's32[1]{0}', space=sflag, size = 0x4, scoped, tag = 'scoped memory for tpu_custom_call.1']
    #allocation8 [shape = 's32[1]{0}', space=sflag, size = 0x4, scoped, tag = 'scoped memory for tpu_custom_call.1']
    #allocation9 [shape = 'u8[8192]{0}', space=vmem, size = 0x2000, scoped, tag = 'input window, operand 1, single buffered']
    #allocation10 [shape = 's32[1]{0}', space=sflag, size = 0x4, scoped, tag = 'scoped memory for tpu_custom_call.1']
    #allocation11 [shape = 'u8[4096]{0}', space=vmem, size = 0x1000, scoped, tag = 'output window, operand 0, single buffered']
    %7 = vsyncpa [#allocation7], 0
    %8 = vsyncpa [#allocation10], 0
    %9 = vsyncpa [#allocation8], 0
    // Predicated region
    $region2: #{tpu_custom_call.1} parent=1 // pred_check
      _
    $region3: #{tpu_custom_call.1} parent=1 // pred_check_branch
      %11 = sbr.rel (0) target = $region5
    $region4: #{tpu_custom_call.1} parent=1 // pred_region
      %s12 = sadd.s32 0, 0
      %p13 = scmp.lt.s32.totalorder %s12, 0
      %s14 = scalar_select %p13, %s12, 0
      %s16 = ssub.s32 256, 256
      %17 = vsyncadd [#allocation7], %s16
      %s18 = smul.addr %s14, 2
      %s19 = smul.addr %s18, 128
      %s20 = scalar_lea.hbm %s0, %s19
      %s22 = sshll.u32 [#allocation6], 4
      %s23 = int_to_ptr.vmem [resolvable:$true] %s22
      %25 = dma.hbm_to_vmem [thread:$0]  %s20, 256, %s23, [#allocation7]
    $region5: #{tpu_custom_call.1} parent=1 // pred_fallthru
      _
    // Predicated region
    $region6: #{tpu_custom_call.1} parent=1 // pred_check
      _
    $region7: #{tpu_custom_call.1} parent=1 // pred_check_branch
      %27 = sbr.rel (0) target = $region9
    $region8: #{tpu_custom_call.1} parent=1 // pred_region
      %s28 = sadd.s32 0, 0
      %p29 = scmp.lt.s32.totalorder %s28, 0
      %s30 = scalar_select %p29, %s28, 0
      %s32 = ssub.s32 256, 256
      %33 = vsyncadd [#allocation10], %s32
      %s34 = smul.addr %s30, 2
      %s35 = smul.addr %s34, 128
      %s36 = scalar_lea.hbm %s1, %s35
      %s38 = sshll.u32 [#allocation9], 4
      %s39 = int_to_ptr.vmem [resolvable:$true] %s38
      %41 = dma.hbm_to_vmem [thread:$0]  %s36, 256, %s39, [#allocation10]
    $region9: #{tpu_custom_call.1} parent=1 // pred_fallthru
      _
    // Predicated region
    $region10: #{tpu_custom_call.1} parent=1 // pred_check
      _
    $region11: #{tpu_custom_call.1} parent=1 // pred_check_branch
      %43 = sbr.rel (0) target = $region13
    $region12: #{tpu_custom_call.1} parent=1 // pred_region
      %44 = dma.done [#allocation7], 256
    $region13: #{tpu_custom_call.1} parent=1 // pred_fallthru
      _
    // Predicated region
    $region14: #{tpu_custom_call.1} parent=1 // pred_check
      _
    $region15: #{tpu_custom_call.1} parent=1 // pred_check_branch
      %46 = sbr.rel (0) target = $region17
    $region16: #{tpu_custom_call.1} parent=1 // pred_region
      %47 = dma.done [#allocation10], 256
    $region17: #{tpu_custom_call.1} parent=1 // pred_fallthru
      _
    %s48 = sadd.s32 0, 0
    %p49 = scmp.lt.s32.totalorder %s48, 0
    %s50 = scalar_select %p49, %s48, 0
    %s51 = sadd.s32 0, 0
    %p52 = scmp.lt.s32.totalorder %s51, 0
    %s53 = scalar_select %p52, %s51, 0
    %p54 = scmp.eq.s32.totalorder 0, 0
    %p55 = scmp.eq.s32.totalorder 0, 0
    %p56 = pnand %p54, %p55
    %p57 = pneg %p56
    // Predicated region
    $region18: #{tpu_custom_call.1} parent=1 // pred_check
      _
    $region19: #{tpu_custom_call.1} parent=1 // pred_check_branch
      %59 = sbr.rel (%p56) target = $region21
    $region20: #{tpu_custom_call.1} parent=1 // pred_region
      %vm60 = vcmask 7168
      %61 = vst.msk [vmem:[#allocation5] sm:$0xff] %vm60, 0.0
    $region21: #{tpu_custom_call.1} parent=1 // pred_fallthru
      _
    // Predicated region
    $region22: #{tpu_custom_call.1} parent=1 // pred_check
      %p62 = pneg %p55
    $region23: #{tpu_custom_call.1} parent=1 // pred_check_branch
      %64 = sbr.rel (%p62) target = $region25
    $region24: #{tpu_custom_call.1} parent=1 // pred_region
      %vm65 = vcmask 7168
      %66 = vst.msk [vmem:[#allocation2] sm:$0xff] %vm65, 0.0
      %67 = vst.msk [vmem:[#allocation3] sm:$0xff] %vm65, 0.0
      %68 = vst.msk [vmem:[#allocation4] sm:$0xff] %vm65, 0.0
    $region25: #{tpu_custom_call.1} parent=1 // pred_fallthru
      _
    %v69 = vld [vmem:[#allocation6] sm:$0xff]
    %v70 = vld [vmem:[#allocation6 + $0x8] sm:$0xff]
    %v71 = vld [vmem:[#allocation9] sm:$0xff]
    %v72 = vld [vmem:[#allocation9 + $0x8] sm:$0xff]
    %vm73 = vcmp.gt.f32.partialorder %v71, 0.0
    %vm74 = vcmp.gt.f32.partialorder %v72, 0.0
    %v75 = vsel %vm73, 1, 0
    %v76 = vsel %vm74, 1, 0
    %v77 = vcvt.s32.f32 %v75
    %v78 = vcvt.s32.f32 %v76
    %v79 = vmax.f32 %v69, 0.0
    %v80 = vmax.f32 %v70, 0.0
    %v81 = vmul.f32 %v69, %v71
    %v82 = vmul.f32 %v70, %v72
    %v83 = vsub.f32 %v79, %v81
    %v84 = vsub.f32 %v80, %v82
    %v85 = vand.u32 2147483647, %v69
    %v86 = vand.u32 2147483647, %v70
    %v87 = vsub.f32 0.0, %v85
    %v88 = vsub.f32 0.0, %v86
    %v89 = vmul.f32 %v87, 1.442695
    %v90 = vpow.pop %v89
    %v91 = vmul.f32 %v88, 1.442695
    %v92 = vpow.pop %v91
    %v93 = vadd.f32 %v90, 1.0
    %v94 = vlog2.pop %v93
    %v95 = vmul.f32 %v94, 0.6931472
    %v96 = vmul.f32 -0.5, %v90
    %v97 = vadd.f32 %v96, 1.0
    %v98 = vmul.f32 %v97, %v90
    %v99 = vand.u32 2147483647, %v90
    %vm100 = vcmp.lt.f32.partialorder %v99, 0.0004427343
    %v101 = vsel %vm100, %v98, %v95
    %v102 = vadd.f32 %v92, 1.0
    %v103 = vlog2.pop %v102
    %v104 = vmul.f32 %v103, 0.6931472
    %v105 = vmul.f32 -0.5, %v92
    %v106 = vadd.f32 %v105, 1.0
    %v107 = vmul.f32 %v106, %v92
    %v108 = vand.u32 2147483647, %v92
    %vm109 = vcmp.lt.f32.partialorder %v108, 0.0004427343
    %v110 = vsel %vm109, %v107, %v104
    %v111 = vadd.f32 %v83, %v101
    %v112 = vadd.f32 %v84, %v110
    %v113 = vld [vmem:[#allocation2] sm:$0xff]
    %v114 = vadd.f32 %v77, %v78
    %115 = vadd.xlane.f32.xlu0 %v114
    %v116 = vpop.xlane.xlu0 %115
    %v117 = vadd.f32 %v113, %v116
    %vm118 = vcmask 7168
    %119 = vst.msk [vmem:[#allocation2] sm:$0xff] %vm118, %v117
    %v120 = vld [vmem:[#allocation3] sm:$0xff]
    %v121 = vadd.f32 %v111, %v112
    %122 = vadd.xlane.f32.xlu0 %v121
    %v123 = vpop.xlane.xlu0 %122
    %v124 = vadd.f32 %v120, %v123
    %125 = vst.msk [vmem:[#allocation3] sm:$0xff] %vm118, %v124
    %v126 = vld [vmem:[#allocation4] sm:$0xff]
    %v127 = vmul.f32 %v111, %v77
    %v128 = vmul.f32 %v112, %v78
    %v129 = vadd.f32 %v127, %v128
    %130 = vadd.xlane.f32.xlu0 %v129
    %v131 = vpop.xlane.xlu0 %130
    %v132 = vadd.f32 %v126, %v131
    %133 = vst.msk [vmem:[#allocation4] sm:$0xff] %vm118, %v132
    // Predicated region
    $region26: #{tpu_custom_call.1} parent=1 // pred_check
      %p134 = pneg %p55
    $region27: #{tpu_custom_call.1} parent=1 // pred_check_branch
      %136 = sbr.rel (%p134) target = $region29
    $region28: #{tpu_custom_call.1} parent=1 // pred_region
      %v137 = vld [vmem:[#allocation2] sm:$0xff]
      %v138 = vadd.f32 %v137, 1.0
      %v139 = vsub.f32 258.0, %v138
      %v140 = vrcp.pop %v138
      %v141 = vmul.f32 259.0, %v140
      %v142 = vrcp.pop %v139
      %v143 = vmul.f32 259.0, %v142
      %v144 = vld [vmem:[#allocation3] sm:$0xff]
      %v145 = vmul.f32 %v143, %v144
      %v146 = vsub.f32 %v141, %v143
      %v147 = vld [vmem:[#allocation4] sm:$0xff]
      %v148 = vmul.f32 %v146, %v147
      %v149 = vadd.f32 %v145, %v148
      %v150 = vld [vmem:[#allocation5] sm:$0xff]
      %v151 = vadd.f32 %v150, %v149
      %152 = vst.msk [vmem:[#allocation5] sm:$0xff] %vm118, %v151
    $region29: #{tpu_custom_call.1} parent=1 // pred_fallthru
      _
    // Predicated region
    $region30: #{tpu_custom_call.1} parent=1 // pred_check
      _
    $region31: #{tpu_custom_call.1} parent=1 // pred_check_branch
      %154 = sbr.rel (%p56) target = $region33
    $region32: #{tpu_custom_call.1} parent=1 // pred_region
      %v155 = vld [vmem:[#allocation5] sm:$0xff]
      %v156 = vsel %vm118, %v155, 0.0
      %157 = vadd.xlane.f32.xlu0 %v156
      %v158 = vpop.xlane.xlu0 %157
      %v159 = vrot.slane %v158, 4
      %v160 = vadd.f32 %v158, %v159
      %v161 = vrot.slane %v160, 2
      %v162 = vadd.f32 %v160, %v161
      %v163 = vrot.slane %v162, 1
      %v164 = vadd.f32 %v162, %v163
      %s165 = vtos %v164
      %v166 = vstv %s165
      %167 = vst [vmem:[#allocation11] sm:$0xff] %v166
    $region33: #{tpu_custom_call.1} parent=1 // pred_fallthru
      _
    // Predicated region
    $region34: #{tpu_custom_call.1} parent=1 // pred_check
      _
    $region35: #{tpu_custom_call.1} parent=1 // pred_check_branch
      %169 = sbr.rel (0) target = $region37
    $region36: #{tpu_custom_call.1} parent=1 // pred_region
      %s171 = ssub.s32 128, 128
      %172 = vsyncadd [#allocation8], %s171
      %s174 = sshll.u32 [#allocation11], 4
      %s175 = int_to_ptr.vmem [resolvable:$true] %s174
      %177 = dma.vmem_to_hbm [thread:$0]  %s175, 128, %s2, [#allocation8]
    $region37: #{tpu_custom_call.1} parent=1 // pred_fallthru
      _
    // Predicated region
    $region38: #{tpu_custom_call.1} parent=1 // pred_check
      _
    $region39: #{tpu_custom_call.1} parent=1 // pred_check_branch
      %179 = sbr.rel (0) target = $region41
    $region40: #{tpu_custom_call.1} parent=1 // pred_region
      %180 = dma.done [#allocation8], 128
    $region41: #{tpu_custom_call.1} parent=1 // pred_fallthru
      _
    %181 = vsyncpa [#allocation7], 1
    %182 = vsyncpa [#allocation10], 1
    %183 = vsyncpa [#allocation8], 1

</llo_original>
